<compile_context>
chip_gen: v6e
topology: v6e:2x2x1
jax: 0.10.0
libtpu: 0.0.40
codegen_flags: <defaults>
</compile_context>

<pallas_src>
import functools

import jax
import jax.numpy as jnp
from jax.experimental import pallas as pl
from jax.experimental.pallas import tpu as pltpu


def _onehot_kernel(x_ref, o_ref, *, offsets, cards, lane_tile, single_lane_tile):
    # x_ref: (TB, n_cols) int32 category ids
    # o_ref: (TB, TW)     int8 slab of the concatenated one-hot output
    tb, tw = o_ref.shape
    x = x_ref[...]

    if single_lane_tile:
        # One lane tile covers the whole concatenated axis: per-column hit
        # sets are disjoint, accumulate with boolean OR in registers and
        # store once.
        lane = jax.lax.broadcasted_iota(jnp.int32, (tb, tw), 1)
        acc = None
        for col, (off, card) in enumerate(zip(offsets, cards)):
            xc = x[:, col:col + 1]                                  # (TB, 1)
            valid = (xc >= 0) & (xc < jnp.int32(card))              # (TB, 1)
            target = jnp.where(valid, xc + jnp.int32(off), jnp.int32(-1))
            hit = lane == target                                    # (TB, TW)
            acc = hit if acc is None else (acc | hit)
        o_ref[...] = acc.astype(o_ref.dtype)
    else:
        # Lane-tiled path: only columns overlapping this lane tile do
        # full-width work.  Hit sets are disjoint, so int8 addition is exact.
        tile_start = pl.program_id(1) * lane_tile
        lane = tile_start + jax.lax.broadcasted_iota(jnp.int32, (tb, tw), 1)
        o_ref[...] = jnp.zeros_like(o_ref)
        for col, (off, card) in enumerate(zip(offsets, cards)):
            intersects = (jnp.int32(off) < tile_start + tw) & \
                         (jnp.int32(off + card) > tile_start)

            @pl.when(intersects)
            def _(col=col, off=off, card=card):
                xc = x[:, col:col + 1]
                valid = (xc >= 0) & (xc < jnp.int32(card))
                target = jnp.where(valid, xc + jnp.int32(off), jnp.int32(-1))
                hit = (lane == target).astype(o_ref.dtype)
                o_ref[...] = o_ref[...] + hit


def one_hot_encoder(x, cardinalities, *, lane_tile=1024):
    """x: (..., n_cols) integer -> (..., sum(cardinalities)) int8 one-hot."""
    cardinalities = [int(c) for c in cardinalities]
    n_cols = x.shape[-1]
    assert n_cols == len(cardinalities)
    assert lane_tile % 128 == 0

    lead_shape = x.shape[:-1]
    B = 1
    for d in lead_shape:
        B *= int(d)
    x2 = x.reshape(B, n_cols).astype(jnp.int32)

    total = int(sum(cardinalities))
    offsets, acc = [], 0
    for c in cardinalities:
        offsets.append(acc)
        acc += c

    # --- Lane (output-width) tiling ------------------------------------------
    single_lane_tile = total <= lane_tile
    tw_block = total if single_lane_tile else lane_tile     # full-dim if small
    n_lane_tiles = 1 if single_lane_tile else pl.cdiv(total, lane_tile)

    # --- Row tiling -----------------------------------------------------------
    # Per-row VMEM: double-buffered int8 output tile + double-buffered int32
    # input tile (lane-padded to >=128) + ~4 output-tile-sized int32 Mosaic
    # temporaries (lane iota, target broadcast, hit mask, cast result).
    vmem_budget = 16 * 1024 * 1024            # conservative across v5e/v6e/v7x
    bytes_per_row = 2 * (tw_block + 4 * max(128, n_cols)) + 4 * 4 * tw_block
    tb_cap = max(32, (vmem_budget // bytes_per_row) // 32 * 32)
    if B <= 32:
        TB = B                                 # full-dim row block (always legal)
    else:
        # >=2 row tiles so v7x's two TensorCores both get work; 32-aligned for
        # the int8 output tile.
        half = pl.cdiv(pl.cdiv(B, 2), 32) * 32
        TB = max(32, min(tb_cap, half))
    n_row_tiles = pl.cdiv(B, TB)

    declared = 2 * TB * (tw_block + 4 * max(128, n_cols))
    temps = 4 * TB * tw_block * 4
    vmem_limit = int(min(max(declared + temps + (4 << 20), 16 << 20), 48 << 20))

    kernel = functools.partial(
        _onehot_kernel,
        offsets=tuple(offsets), cards=tuple(cardinalities),
        lane_tile=tw_block, single_lane_tile=single_lane_tile)

    out = pl.pallas_call(
        kernel,
        out_shape=jax.ShapeDtypeStruct((B, total), jnp.int8),
        grid_spec=pltpu.PrefetchScalarGridSpec(
            num_scalar_prefetch=0,
            grid=(n_row_tiles, n_lane_tiles),
            in_specs=[pl.BlockSpec((TB, n_cols), lambda i, j: (i, 0))],
            out_specs=pl.BlockSpec((TB, tw_block), lambda i, j: (i, j)),
        ),
        compiler_params=pltpu.CompilerParams(
            dimension_semantics=("parallel", "parallel"),
            vmem_limit_bytes=vmem_limit,
        ),
        cost_estimate=pl.CostEstimate(
            flops=2 * B * total,
            transcendentals=0,
            bytes_accessed=B * (4 * n_cols + total),
        ),
    )(x2)

    return out.reshape(lead_shape + (total,))


def _reference(x, cardinalities):
    cols = [jax.nn.one_hot(x[..., j], int(c), dtype=jnp.int32)
            for j, c in enumerate(cardinalities)]
    return jnp.concatenate(cols, axis=-1)


def _make_x(key, batch_shape, cards):
    ks = jax.random.split(key, len(cards))
    cols = [jax.random.randint(ks[j], batch_shape, 0, cards[j], dtype=jnp.int32)
            for j in range(len(cards))]
    return jnp.stack(cols, axis=-1)


if __name__ == "__main__":
    # 1) Small batch, small total -> single lane tile, full-dim blocks.
    cards1 = [3, 5, 7]
    x1 = _make_x(jax.random.PRNGKey(0), (16,), cards1)
    o1 = jax.block_until_ready(one_hot_encoder(x1, cards1))
    assert o1.shape == (16, sum(cards1)), o1.shape
    assert o1.dtype == jnp.int8
    assert bool(jnp.all(o1.astype(jnp.int32) == _reference(x1, cards1)))

    # 2) Batch not a multiple of 8 (full-dim row block path).
    x2 = _make_x(jax.random.PRNGKey(1), (13,), cards1)
    o2 = jax.block_until_ready(one_hot_encoder(x2, cards1))
    assert bool(jnp.all(o2.astype(jnp.int32) == _reference(x2, cards1)))

    # 3) Multiple row tiles + multiple lane tiles (partial last tiles on both
    #    axes, pl.when column-intersection guards exercised).
    cards3 = [100, 60, 7]                  # total = 167 > lane_tile=128
    x3 = _make_x(jax.random.PRNGKey(2), (80,), cards3)
    o3 = jax.block_until_ready(one_hot_encoder(x3, cards3, lane_tile=128))
    assert o3.shape == (80, sum(cards3)), o3.shape
    assert bool(jnp.all(o3.astype(jnp.int32) == _reference(x3, cards3)))

    # 4) Leading dims (..., n_cols).
    x4 = _make_x(jax.random.PRNGKey(3), (2, 12), cards1)
    o4 = jax.block_until_ready(one_hot_encoder(x4, cards1))
    assert o4.shape == (2, 12, sum(cards1)), o4.shape
    assert bool(jnp.all(o4.astype(jnp.int32) == _reference(x4, cards1)))

    print("KERNEL_OK")
</pallas_src>

<mosaic_0001>
module attributes {stable_mosaic.version = 11 : i64} {
  func.func @_onehot_kernel(%arg0: i32, %arg1: i32, %arg2: memref<16x3xi32, #tpu.memory_space<vmem>>, %arg3: memref<16x15xi8, #tpu.memory_space<vmem>>) attributes {dimension_semantics = [#tpu.dimension_semantics<parallel>, #tpu.dimension_semantics<parallel>], iteration_bounds = array<i64: 1, 1>, scalar_prefetch = 0 : i64, scratch_operands = 0 : i64, tpu.core_type = #tpu.core_type<tc>, window_params = [{transform_indices = @transform_0, window_bounds = array<i64: 16, 3>}, {transform_indices = @transform_1, window_bounds = array<i64: 16, 15>}]} {
    %c0 = arith.constant 0 : index
    %c0_0 = arith.constant 0 : index
    %0 = vector.load %arg2[%c0, %c0_0] : memref<16x3xi32, #tpu.memory_space<vmem>>, vector<16x3xi32>
    %1 = tpu.iota {dimensions = array<i32: 1>} : vector<16x15xi32>
    %2 = vector.extract_strided_slice %0 {offsets = [0, 0], sizes = [16, 1], strides = [1, 1]} : vector<16x3xi32> to vector<16x1xi32>
    %c0_i32 = arith.constant 0 : i32
    %3 = vector.broadcast %c0_i32 : i32 to vector<16x1xi32>
    %4 = arith.cmpi sge, %2, %3 : vector<16x1xi32>
    %c3_i32 = arith.constant 3 : i32
    %5 = vector.broadcast %c3_i32 : i32 to vector<16x1xi32>
    %6 = arith.cmpi slt, %2, %5 : vector<16x1xi32>
    %7 = arith.andi %4, %6 : vector<16x1xi1>
    %c0_i32_1 = arith.constant 0 : i32
    %8 = vector.broadcast %c0_i32_1 : i32 to vector<16x1xi32>
    %9 = arith.addi %2, %8 : vector<16x1xi32>
    %c-1_i32 = arith.constant -1 : i32
    %10 = vector.broadcast %c-1_i32 : i32 to vector<16x1xi32>
    %11 = arith.select %7, %9, %10 : vector<16x1xi1>, vector<16x1xi32>
    %12 = vector.broadcast %11 : vector<16x1xi32> to vector<16x15xi32>
    %13 = arith.cmpi eq, %1, %12 : vector<16x15xi32>
    %14 = vector.extract_strided_slice %0 {offsets = [0, 1], sizes = [16, 1], strides = [1, 1]} : vector<16x3xi32> to vector<16x1xi32>
    %c0_i32_2 = arith.constant 0 : i32
    %15 = vector.broadcast %c0_i32_2 : i32 to vector<16x1xi32>
    %16 = arith.cmpi sge, %14, %15 : vector<16x1xi32>
    %c5_i32 = arith.constant 5 : i32
    %17 = vector.broadcast %c5_i32 : i32 to vector<16x1xi32>
    %18 = arith.cmpi slt, %14, %17 : vector<16x1xi32>
    %19 = arith.andi %16, %18 : vector<16x1xi1>
    %c3_i32_3 = arith.constant 3 : i32
    %20 = vector.broadcast %c3_i32_3 : i32 to vector<16x1xi32>
    %21 = arith.addi %14, %20 : vector<16x1xi32>
    %c-1_i32_4 = arith.constant -1 : i32
    %22 = vector.broadcast %c-1_i32_4 : i32 to vector<16x1xi32>
    %23 = arith.select %19, %21, %22 : vector<16x1xi1>, vector<16x1xi32>
    %24 = vector.broadcast %23 : vector<16x1xi32> to vector<16x15xi32>
    %25 = arith.cmpi eq, %1, %24 : vector<16x15xi32>
    %26 = arith.ori %13, %25 : vector<16x15xi1>
    %27 = vector.extract_strided_slice %0 {offsets = [0, 2], sizes = [16, 1], strides = [1, 1]} : vector<16x3xi32> to vector<16x1xi32>
    %c0_i32_5 = arith.constant 0 : i32
    %28 = vector.broadcast %c0_i32_5 : i32 to vector<16x1xi32>
    %29 = arith.cmpi sge, %27, %28 : vector<16x1xi32>
    %c7_i32 = arith.constant 7 : i32
    %30 = vector.broadcast %c7_i32 : i32 to vector<16x1xi32>
    %31 = arith.cmpi slt, %27, %30 : vector<16x1xi32>
    %32 = arith.andi %29, %31 : vector<16x1xi1>
    %c8_i32 = arith.constant 8 : i32
    %33 = vector.broadcast %c8_i32 : i32 to vector<16x1xi32>
    %34 = arith.addi %27, %33 : vector<16x1xi32>
    %c-1_i32_6 = arith.constant -1 : i32
    %35 = vector.broadcast %c-1_i32_6 : i32 to vector<16x1xi32>
    %36 = arith.select %32, %34, %35 : vector<16x1xi1>, vector<16x1xi32>
    %37 = vector.broadcast %36 : vector<16x1xi32> to vector<16x15xi32>
    %38 = arith.cmpi eq, %1, %37 : vector<16x15xi32>
    %39 = arith.ori %26, %38 : vector<16x15xi1>
    %40 = arith.extui %39 : vector<16x15xi1> to vector<16x15xi8>
    %c0_7 = arith.constant 0 : index
    %c0_8 = arith.constant 0 : index
    %41 = vector.load %arg3[%c0_7, %c0_8] : memref<16x15xi8, #tpu.memory_space<vmem>>, vector<16x15xi8>
    tpu.vector_store %arg3[%c0_7, %c0_8], %40 {strides = array<i32>} : memref<16x15xi8, #tpu.memory_space<vmem>>, vector<16x15xi8>,
    return
  }
  func.func @transform_0(%arg0: i32, %arg1: i32) -> (i32, i32) {
    %c0_i32 = arith.constant 0 : i32
    %c0_i32_0 = arith.constant 0 : i32
    return %arg0, %c0_i32 : i32, i32
  }
  func.func @transform_1(%arg0: i32, %arg1: i32) -> (i32, i32) {
    %c0_i32 = arith.constant 0 : i32
    return %arg0, %arg1 : i32, i32
  }
}

</mosaic_0001>

<llo_original>
// kernel: tpu_custom_call.1
$region0: #{tpu_custom_call.1}
  #allocation0 [shape = 'u32[]', space=smem, size = 0x4, offset = 0x4, fixed_abs, tag = 'smem constant byte address 0x4 - core index']
  #allocation1 [shape = 'u32[144,128]{1,0:T(1,128)}', space=vmem, size = 0x12000, scoped, tag = 'internal scratch']
  %s0 = inlined_call_operand.vmem [shape: s32[16,3], index: 0, kind: input, shape index: {}]
  %s1 = inlined_call_operand.hbm [shape: s8[16,15], index: 1, kind: output, shape index: {}]
  %s2 = sld [smem:[#allocation0]]
  $region14: #{tpu_custom_call.1} parent=0
    _
  %s4 = ssub.s32 1, %s2
  %s5 = scalar_select 0, %s4, %s2
  $region1: #{tpu_custom_call.1} parent=0
    #allocation2 [shape = 'u8[2048]{0}', space=vmem, size = 0x800, scoped, tag = 'output window, operand 0, single buffered']
    #allocation3 [shape = 's32[1]{0}', space=sflag, size = 0x4, scoped, tag = 'scoped memory for tpu_custom_call.1']
    %6 = vsyncpa [#allocation3], 0
    // Predicated region
    $region2: #{tpu_custom_call.1} parent=1 // pred_check
      _
    $region3: #{tpu_custom_call.1} parent=1 // pred_check_branch
      %8 = sbr.rel (0) target = $region5
    $region4: #{tpu_custom_call.1} parent=1 // pred_region
      _
    $region5: #{tpu_custom_call.1} parent=1 // pred_fallthru
      _
    %v11 = vld [vmem:[%s0] sm:$0xff]
    %v12 = vld [vmem:[%s0 + $0x8] sm:$0xff]
    %v13 = vlaneseq
    %v14 = vand.u32 %v13, 127
    %vm15 = vcmp.ge.s32.totalorder %v11, 0
    %vm16 = vcmp.ge.s32.totalorder %v12, 0
    %vm17 = vcmp.lt.s32.totalorder %v11, 3
    %vm18 = vcmp.lt.s32.totalorder %v12, 3
    %vm19 = vmand %vm15, %vm17
    %vm20 = vmand %vm16, %vm18
    %v21 = vsel %vm19, %v11, 4294967295
    %v22 = vsel %vm20, %v12, 4294967295
    %23 = vset.pattern.permute.xlu0 0
    %24 = vperm.xlu0 %23, %v21
    %v25 = vpop.permute.xlu0 %24
    %26 = vset.pattern.permute.xlu0 0
    %27 = vperm.xlu0 %26, %v22
    %v28 = vpop.permute.xlu0 %27
    %vm29 = vcmp.eq.s32.totalorder %v14, %v25
    %vm30 = vcmp.eq.s32.totalorder %v14, %v28
    %vm31 = vcmp.lt.s32.totalorder %v11, 5
    %vm32 = vcmp.lt.s32.totalorder %v12, 5
    %vm33 = vmand %vm15, %vm31
    %vm34 = vmand %vm16, %vm32
    %v35 = vadd.s32 %v11, 3
    %v36 = vadd.s32 %v12, 3
    %v37 = vsel %vm33, %v35, 4294967295
    %v38 = vsel %vm34, %v36, 4294967295
    %39 = vset.pattern.permute.xlu0 1
    %40 = vperm.xlu0 %39, %v37
    %v41 = vpop.permute.xlu0 %40
    %42 = vset.pattern.permute.xlu0 1
    %43 = vperm.xlu0 %42, %v38
    %v44 = vpop.permute.xlu0 %43
    %vm45 = vcmp.eq.s32.totalorder %v14, %v41
    %vm46 = vcmp.eq.s32.totalorder %v14, %v44
    %vm47 = vmor %vm29, %vm45
    %vm48 = vmor %vm30, %vm46
    %vm49 = vcmp.lt.s32.totalorder %v11, 7
    %vm50 = vcmp.lt.s32.totalorder %v12, 7
    %vm51 = vmand %vm15, %vm49
    %vm52 = vmand %vm16, %vm50
    %v53 = vadd.s32 %v11, 8
    %v54 = vadd.s32 %v12, 8
    %v55 = vsel %vm51, %v53, 4294967295
    %v56 = vsel %vm52, %v54, 4294967295
    %57 = vset.pattern.permute.xlu0 2
    %58 = vperm.xlu0 %57, %v55
    %v59 = vpop.permute.xlu0 %58
    %60 = vset.pattern.permute.xlu0 2
    %61 = vperm.xlu0 %60, %v56
    %v62 = vpop.permute.xlu0 %61
    %vm63 = vcmp.eq.s32.totalorder %v14, %v59
    %vm64 = vcmp.eq.s32.totalorder %v14, %v62
    %vm65 = vmor %vm47, %vm63
    %vm66 = vmor %vm48, %vm64
    %vm67 = vmpackc.low %vm66, %vm65
    %vm68 = vmpackc.even %vm67, %vm67
    %v69 = vsel %vm68, 16843009, 0
    %v70 = vunpack.c.0.s8 %v69
    %v71 = vunpack.c.1.s8 %v69
    %v72 = vpack.c.b16 %v70, %v70
    %v73 = vpack.c.b8 %v72, %v72
    %v74 = vpack.c.b16 %v71, %v71
    %v75 = vpack.c.b8 %v74, %v74
    %vm76 = vcmask 115712
    %77 = vst.msk [vmem:[#allocation2] sm:$0x3] %vm76, %v73
    %78 = vst.msk [vmem:[#allocation2 + $0x2] sm:$0x3] %vm76, %v75
    // Predicated region
    $region6: #{tpu_custom_call.1} parent=1 // pred_check
      _
    $region7: #{tpu_custom_call.1} parent=1 // pred_check_branch
      %80 = sbr.rel (0) target = $region9
    $region8: #{tpu_custom_call.1} parent=1 // pred_region
      %s82 = ssub.s32 64, 64
      %83 = vsyncadd [#allocation3], %s82
      %s84 = sshll.u32 [#allocation2], 4
      %s85 = int_to_ptr.vmem [resolvable:$true] %s84
      %90 = dma.vmem_to_hbm [thread:$0]  %s85, 64, %s1, [#allocation3], 32, 32, 2
    $region9: #{tpu_custom_call.1} parent=1 // pred_fallthru
      _
    // Predicated region
    $region10: #{tpu_custom_call.1} parent=1 // pred_check
      _
    $region11: #{tpu_custom_call.1} parent=1 // pred_check_branch
      %92 = sbr.rel (0) target = $region13
    $region12: #{tpu_custom_call.1} parent=1 // pred_region
      %93 = dma.done [#allocation3], 64
    $region13: #{tpu_custom_call.1} parent=1 // pred_fallthru
      _
    %94 = vsyncpa [#allocation3], 1

</llo_original>
